<compile_context>
chip_gen: v7x
topology: tpu7x:2x2x1
jax: 0.10.0
libtpu: 0.0.40
codegen_flags: <defaults>
</compile_context>

<pallas_src>
import jax
import jax.numpy as jnp
import jax.scipy.linalg as jsl
from jax.experimental import pallas as pl
from jax.experimental.pallas import tpu as pltpu

# Deterministic GP "hyper-parameters" (the module __init__ receives a trained
# model/likelihood; here they are fixed in-script).
LENGTHSCALE = 1.5
OUTPUTSCALE = 1.0
NOISE       = 0.1


def _round_up(x, m):
    return (x + m - 1) // m * m


def _vmem_capacity_bytes():
    """Physical VMEM of the current generation (fallback: v7x's 64 MiB)."""
    get_info = getattr(pltpu, "get_tpu_info", None)
    if get_info is not None:
        try:
            cap = getattr(get_info(), "vmem_capacity_bytes", None)
            if cap:
                return int(cap)
        except Exception:
            pass
    return 64 << 20


def _gp_mean_kernel(xt_ref, xtrT_ref, xtrsq_ref, alpha_ref, out_ref,
                    acc_ref, xtsq_ref):
    """Grid point (i, j): row tile i of x_test against training-column tile j.

    xt_ref    : [TILE_N, D_pad]  test rows (zero-padded features); constant in j
    xtrT_ref  : [D_pad, TILE_M]  x_train^T column tile
    xtrsq_ref : [1, TILE_M]      ||x_train||^2 per column
    alpha_ref : [1, TILE_M]      (K + sigma^2 I)^{-1} y (0 in padded columns)
    out_ref   : [TILE_N, 1]      predictive mean (= energy), written at last j
    acc_ref   : [TILE_N, 1] f32  running sum over column tiles (scratch)
    xtsq_ref  : [TILE_N, 1] f32  ||x_test||^2 per row (scratch, filled at j==0)
    """
    j = pl.program_id(1)

    @pl.when(j == 0)
    def _():
        xt0 = xt_ref[...]
        xtsq_ref[...] = jnp.sum(xt0 * xt0, axis=-1, keepdims=True)
        acc_ref[...] = jnp.zeros_like(acc_ref)

    # Pairwise squared distances via one MXU matmul (f32 accumulation).
    cross = jnp.dot(xt_ref[...], xtrT_ref[...],
                    preferred_element_type=jnp.float32)            # [Tn, Tm]
    sqdist = jnp.maximum(xtsq_ref[...] + xtrsq_ref[...] - 2.0 * cross, 0.0)

    # RBF cross-covariance — exp runs on the EUP slot (binding unit for small D).
    inv_two_ls2 = -0.5 / (LENGTHSCALE * LENGTHSCALE)
    k_star = OUTPUTSCALE * jnp.exp(inv_two_ls2 * sqdist)           # [Tn, Tm]

    # Contraction against alpha as VPU multiply + lane reduction (no MXU).
    acc_ref[...] += jnp.sum(k_star * alpha_ref[...], axis=-1, keepdims=True)

    @pl.when(j == pl.num_programs(1) - 1)
    def _():
        out_ref[...] = acc_ref[...]


def gp_energy(x_test, x_train, y_train):
    """energy = predictive mean of the GP at x_test (matches module forward)."""
    x_test = x_test.astype(jnp.float32)
    x_train = x_train.astype(jnp.float32)
    y_train = y_train.astype(jnp.float32)
    n, d = x_test.shape
    m, _ = x_train.shape

    # --- glue (plain JAX, once per training set): Cholesky factorization ----
    # TODO(synk): Cholesky / triangular solve has no clean Pallas equivalent;
    # it is a one-time training-set cost and stays outside the kernel.
    xtr_sq = jnp.sum(x_train * x_train, axis=1)                     # [M]
    sq_tr = xtr_sq[:, None] + xtr_sq[None, :] - 2.0 * (x_train @ x_train.T)
    k_train = OUTPUTSCALE * jnp.exp(-0.5 * sq_tr / (LENGTHSCALE ** 2))
    k_noisy = k_train + NOISE * jnp.eye(m, dtype=jnp.float32)
    chol = jnp.linalg.cholesky(k_noisy)
    alpha = jsl.cho_solve((chol, True), y_train)                    # [M]

    # --- hardware-friendly shapes / generation-aware tiling -----------------
    d_pad = _round_up(d, 128)                         # lane width
    m_pad = _round_up(m, 128)                         # minimal M padding

    vmem_cap = _vmem_capacity_bytes()
    vmem_limit = max(32 << 20, int(0.70 * vmem_cap))  # ~30% headroom
    budget = int(0.75 * vmem_limit)                   # slack for compiler scratch

    # Row tile: larger on 128 MiB parts (v5e/v6e), at least 2 tiles when N
    # allows so the "parallel" axis shards across both v7x TensorCores.
    base_tile_n = 512 if vmem_cap >= (96 << 20) else 256
    n_pad8 = _round_up(max(n, 8), 8)
    tile_n = min(base_tile_n, n_pad8)
    if n_pad8 >= 16:
        tile_n = min(tile_n, _round_up(pl.cdiv(n_pad8, 2), 8))

    def _step_bytes(tn, tm):
        inputs = 2 * 4 * (tn * d_pad + d_pad * tm + 2 * tm)   # double-buffered
        output = 2 * 4 * tn * 128                              # lane-padded (tn,1)
        scratch = 2 * 4 * tn * 128                              # acc + xtsq
        interm = 4 * 4 * tn * tm                                 # cross/sqdist/k*/prod
        return inputs + output + scratch + interm

    # Column tile: largest multiple of 128 (<= 2048) that divides m_pad and
    # fits the budget — divisor choice keeps exp work free of extra padding.
    tile_m = 128
    for cand in range(min(2048, m_pad), 0, -128):
        if m_pad % cand == 0 and _step_bytes(tile_n, cand) <= budget:
            tile_m = cand
            break
    while _step_bytes(tile_n, tile_m) > budget and tile_n > 8:
        tile_n = max(8, _round_up(tile_n // 2, 8))

    n_pad = _round_up(n, tile_n)
    grid = (n_pad // tile_n, m_pad // tile_m)

    # --- pad operands; padded alpha columns are 0 so they contribute nothing -
    xt_p = jnp.zeros((n_pad, d_pad), jnp.float32).at[:n, :d].set(x_test)
    xtrT_p = jnp.zeros((d_pad, m_pad), jnp.float32).at[:d, :m].set(x_train.T)
    xtrsq_p = jnp.zeros((1, m_pad), jnp.float32).at[0, :m].set(xtr_sq)
    alpha_p = jnp.zeros((1, m_pad), jnp.float32).at[0, :m].set(alpha)

    cost = pl.CostEstimate(
        flops=int(2 * n_pad * m_pad * d_pad + 6 * n_pad * m_pad),
        transcendentals=int(n_pad * m_pad),
        bytes_accessed=int(4 * (n_pad * d_pad
                                + grid[0] * (d_pad * m_pad + 2 * m_pad)
                                + n_pad)),
    )

    out = pl.pallas_call(
        _gp_mean_kernel,
        out_shape=jax.ShapeDtypeStruct((n_pad, 1), jnp.float32),
        grid=grid,
        in_specs=[
            pl.BlockSpec((tile_n, d_pad), lambda i, j: (i, 0)),   # x_test rows
            pl.BlockSpec((d_pad, tile_m), lambda i, j: (0, j)),   # x_train^T cols
            pl.BlockSpec((1, tile_m),     lambda i, j: (0, j)),   # ||x_train||^2
            pl.BlockSpec((1, tile_m),     lambda i, j: (0, j)),   # alpha row
        ],
        out_specs=pl.BlockSpec((tile_n, 1), lambda i, j: (i, 0)),
        scratch_shapes=[
            pltpu.VMEM((tile_n, 1), jnp.float32),                 # accumulator
            pltpu.VMEM((tile_n, 1), jnp.float32),                 # ||x_test||^2
        ],
        compiler_params=pltpu.CompilerParams(
            dimension_semantics=("parallel", "arbitrary"),
            vmem_limit_bytes=int(vmem_limit),
        ),
        cost_estimate=cost,
    )(xt_p, xtrT_p, xtrsq_p, alpha_p)

    return out[:n, 0]


def _reference_energy(x_test, x_train, y_train):
    """Pure-JAX reference of the same math, for a correctness check."""
    m = x_train.shape[0]
    xtr_sq = jnp.sum(x_train * x_train, axis=1)
    sq_tr = xtr_sq[:, None] + xtr_sq[None, :] - 2.0 * (x_train @ x_train.T)
    k_train = OUTPUTSCALE * jnp.exp(-0.5 * sq_tr / LENGTHSCALE ** 2)
    chol = jnp.linalg.cholesky(k_train + NOISE * jnp.eye(m))
    alpha = jsl.cho_solve((chol, True), y_train)
    sq = (jnp.sum(x_test ** 2, 1, keepdims=True) + xtr_sq[None, :]
          - 2.0 * x_test @ x_train.T)
    k_star = OUTPUTSCALE * jnp.exp(-0.5 * sq / LENGTHSCALE ** 2)
    return k_star @ alpha


if __name__ == "__main__":
    key = jax.random.PRNGKey(0)
    k1, k2, k3 = jax.random.split(key, 3)

    N, M, D = 16, 64, 32          # test points, train points, input dim
    x_test = jax.random.normal(k1, (N, D), dtype=jnp.float32)
    x_train = jax.random.normal(k2, (M, D), dtype=jnp.float32)
    y_train = jax.random.normal(k3, (M,), dtype=jnp.float32)

    energy = gp_energy(x_test, x_train, y_train)
    jax.block_until_ready(energy)

    ref = _reference_energy(x_test, x_train, y_train)
    assert energy.shape == (N,)
    assert jnp.allclose(energy, ref, atol=1e-4, rtol=1e-4), (energy, ref)

    print("KERNEL_OK")
</pallas_src>

<mosaic_0001>
module attributes {stable_mosaic.version = 11 : i64} {
  func.func @_gp_mean_kernel(%arg0: i32, %arg1: i32, %arg2: memref<8x128xf32, #tpu.memory_space<vmem>>, %arg3: memref<128x128xf32, #tpu.memory_space<vmem>>, %arg4: memref<1x128xf32, #tpu.memory_space<vmem>>, %arg5: memref<1x128xf32, #tpu.memory_space<vmem>>, %arg6: memref<8x1xf32, #tpu.memory_space<vmem>>, %arg7: memref<8x1xf32, #tpu.memory_space<vmem>>, %arg8: memref<8x1xf32, #tpu.memory_space<vmem>>) attributes {dimension_semantics = [#tpu.dimension_semantics<parallel>, #tpu.dimension_semantics<arbitrary>], iteration_bounds = array<i64: 2, 1>, scalar_prefetch = 0 : i64, scratch_operands = 2 : i64, tpu.core_type = #tpu.core_type<tc>, window_params = [{transform_indices = @transform_0, window_bounds = array<i64: 8, 128>}, {transform_indices = @transform_1, window_bounds = array<i64: 128, 128>}, {transform_indices = @transform_2, window_bounds = array<i64: 1, 128>}, {transform_indices = @transform_3, window_bounds = array<i64: 1, 128>}, {transform_indices = @transform_4, window_bounds = array<i64: 8, 1>}]} {
    %c0_i32 = arith.constant 0 : i32
    %0 = arith.cmpi eq, %arg1, %c0_i32 : i32
    %1 = arith.extui %0 : i1 to i32
    %c0_i32_0 = arith.constant 0 : i32
    %2 = arith.cmpi ne, %1, %c0_i32_0 : i32
    scf.if %2 {
      %c0_21 = arith.constant 0 : index
      %c0_22 = arith.constant 0 : index
      %32 = vector.load %arg2[%c0_21, %c0_22] : memref<8x128xf32, #tpu.memory_space<vmem>>, vector<8x128xf32>
      %33 = arith.mulf %32, %32 : vector<8x128xf32>
      %cst_23 = arith.constant dense<0.000000e+00> : vector<8xf32>
      %34 = vector.multi_reduction <add>, %33, %cst_23 [1] : vector<8x128xf32> to vector<8xf32>
      %35 = vector.shape_cast %34 : vector<8xf32> to vector<8x1xf32>
      %c0_24 = arith.constant 0 : index
      %c0_25 = arith.constant 0 : index
      %36 = vector.load %arg8[%c0_24, %c0_25] : memref<8x1xf32, #tpu.memory_space<vmem>>, vector<8x1xf32>
      tpu.vector_store %arg8[%c0_24, %c0_25], %35 {strides = array<i32>} : memref<8x1xf32, #tpu.memory_space<vmem>>, vector<8x1xf32>,
      %cst_26 = arith.constant 0.000000e+00 : f32
      %37 = vector.broadcast %cst_26 : f32 to vector<8x1xf32>
      %c0_27 = arith.constant 0 : index
      %c0_28 = arith.constant 0 : index
      %38 = vector.load %arg7[%c0_27, %c0_28] : memref<8x1xf32, #tpu.memory_space<vmem>>, vector<8x1xf32>
      tpu.vector_store %arg7[%c0_27, %c0_28], %37 {strides = array<i32>} : memref<8x1xf32, #tpu.memory_space<vmem>>, vector<8x1xf32>,
    } else {
    }
    %c0 = arith.constant 0 : index
    %c0_1 = arith.constant 0 : index
    %3 = vector.load %arg2[%c0, %c0_1] : memref<8x128xf32, #tpu.memory_space<vmem>>, vector<8x128xf32>
    %c0_2 = arith.constant 0 : index
    %c0_3 = arith.constant 0 : index
    %4 = vector.load %arg3[%c0_2, %c0_3] : memref<128x128xf32, #tpu.memory_space<vmem>>, vector<128x128xf32>
    %cst = arith.constant dense<0.000000e+00> : vector<8x128xf32>
    %5 = tpu.matmul %3, %4, %cst {dimension_numbers = #tpu.dot_dimension_numbers<[1], [0], [0], [1], [0, 0, 1, 1], [], []>} : vector<8x128xf32>, vector<128x128xf32>, vector<8x128xf32> -> vector<8x128xf32>
    %c0_4 = arith.constant 0 : index
    %c0_5 = arith.constant 0 : index
    %6 = vector.load %arg8[%c0_4, %c0_5] : memref<8x1xf32, #tpu.memory_space<vmem>>, vector<8x1xf32>
    %c0_6 = arith.constant 0 : index
    %c0_7 = arith.constant 0 : index
    %7 = vector.load %arg4[%c0_6, %c0_7] : memref<1x128xf32, #tpu.memory_space<vmem>>, vector<1x128xf32>
    %8 = vector.broadcast %6 : vector<8x1xf32> to vector<8x128xf32>
    %9 = vector.broadcast %7 : vector<1x128xf32> to vector<8x128xf32>
    %10 = arith.addf %8, %9 : vector<8x128xf32>
    %cst_8 = arith.constant 2.000000e+00 : f32
    %11 = vector.broadcast %cst_8 : f32 to vector<8x128xf32>
    %12 = arith.mulf %11, %5 : vector<8x128xf32>
    %13 = arith.subf %10, %12 : vector<8x128xf32>
    %cst_9 = arith.constant 0.000000e+00 : f32
    %14 = vector.broadcast %cst_9 : f32 to vector<8x128xf32>
    %15 = arith.maximumf %13, %14 : vector<8x128xf32>
    %cst_10 = arith.constant -0.222222224 : f32
    %16 = vector.broadcast %cst_10 : f32 to vector<8x128xf32>
    %17 = arith.mulf %16, %15 : vector<8x128xf32>
    %18 = math.exp %17 : vector<8x128xf32>
    %cst_11 = arith.constant 1.000000e+00 : f32
    %19 = vector.broadcast %cst_11 : f32 to vector<8x128xf32>
    %20 = arith.mulf %19, %18 : vector<8x128xf32>
    %c0_12 = arith.constant 0 : index
    %c0_13 = arith.constant 0 : index
    %21 = vector.load %arg7[%c0_12, %c0_13] : memref<8x1xf32, #tpu.memory_space<vmem>>, vector<8x1xf32>
    %c0_14 = arith.constant 0 : index
    %c0_15 = arith.constant 0 : index
    %22 = vector.load %arg5[%c0_14, %c0_15] : memref<1x128xf32, #tpu.memory_space<vmem>>, vector<1x128xf32>
    %23 = vector.broadcast %22 : vector<1x128xf32> to vector<8x128xf32>
    %24 = arith.mulf %20, %23 : vector<8x128xf32>
    %cst_16 = arith.constant dense<0.000000e+00> : vector<8xf32>
    %25 = vector.multi_reduction <add>, %24, %cst_16 [1] : vector<8x128xf32> to vector<8xf32>
    %26 = vector.shape_cast %25 : vector<8xf32> to vector<8x1xf32>
    %27 = arith.addf %21, %26 : vector<8x1xf32>
    %c0_17 = arith.constant 0 : index
    %c0_18 = arith.constant 0 : index
    %28 = vector.load %arg7[%c0_17, %c0_18] : memref<8x1xf32, #tpu.memory_space<vmem>>, vector<8x1xf32>
    tpu.vector_store %arg7[%c0_17, %c0_18], %27 {strides = array<i32>} : memref<8x1xf32, #tpu.memory_space<vmem>>, vector<8x1xf32>,
    %c0_i32_19 = arith.constant 0 : i32
    %29 = arith.cmpi eq, %arg1, %c0_i32_19 : i32
    %30 = arith.extui %29 : i1 to i32
    %c0_i32_20 = arith.constant 0 : i32
    %31 = arith.cmpi ne, %30, %c0_i32_20 : i32
    scf.if %31 {
      %c0_21 = arith.constant 0 : index
      %c0_22 = arith.constant 0 : index
      %32 = vector.load %arg7[%c0_21, %c0_22] : memref<8x1xf32, #tpu.memory_space<vmem>>, vector<8x1xf32>
      %c0_23 = arith.constant 0 : index
      %c0_24 = arith.constant 0 : index
      %33 = vector.load %arg6[%c0_23, %c0_24] : memref<8x1xf32, #tpu.memory_space<vmem>>, vector<8x1xf32>
      tpu.vector_store %arg6[%c0_23, %c0_24], %32 {strides = array<i32>} : memref<8x1xf32, #tpu.memory_space<vmem>>, vector<8x1xf32>,
    } else {
    }
    return
  }
  func.func @transform_0(%arg0: i32, %arg1: i32) -> (i32, i32) {
    %c0_i32 = arith.constant 0 : i32
    %c0_i32_0 = arith.constant 0 : i32
    return %arg0, %c0_i32 : i32, i32
  }
  func.func @transform_1(%arg0: i32, %arg1: i32) -> (i32, i32) {
    %c0_i32 = arith.constant 0 : i32
    %c0_i32_0 = arith.constant 0 : i32
    return %c0_i32, %arg1 : i32, i32
  }
  func.func @transform_2(%arg0: i32, %arg1: i32) -> (i32, i32) {
    %c0_i32 = arith.constant 0 : i32
    %c0_i32_0 = arith.constant 0 : i32
    return %c0_i32, %arg1 : i32, i32
  }
  func.func @transform_3(%arg0: i32, %arg1: i32) -> (i32, i32) {
    %c0_i32 = arith.constant 0 : i32
    %c0_i32_0 = arith.constant 0 : i32
    return %c0_i32, %arg1 : i32, i32
  }
  func.func @transform_4(%arg0: i32, %arg1: i32) -> (i32, i32) {
    %c0_i32 = arith.constant 0 : i32
    %c0_i32_0 = arith.constant 0 : i32
    return %arg0, %c0_i32 : i32, i32
  }
}

</mosaic_0001>

<llo_original>
// kernel: tpu_custom_call.1
$region0: #{tpu_custom_call.1}
  #allocation0 [shape = 'u32[]', space=smem, size = 0x4, offset = 0x4, fixed_abs, tag = 'smem constant byte address 0x4 - core index']
  #allocation1 [shape = 'u32[144,128]{1,0:T(1,128)}', space=vmem, size = 0x12000, scoped, tag = 'internal scratch']
  #allocation2 [shape = 'f32[8,1]{1,0:T(8,128)}', space=vmem, size = 0x1000, scoped, tag = 'scratch operand']
  #allocation3 [shape = 'f32[8,1]{1,0:T(8,128)}', space=vmem, size = 0x1000, scoped, tag = 'scratch operand']
  %s0 = inlined_call_operand.hbm [shape: f32[16,128], index: 0, kind: input, shape index: {}]
  %s1 = inlined_call_operand.hbm [shape: f32[128,128], index: 1, kind: input, shape index: {}]
  %s2 = inlined_call_operand.vmem [shape: f32[1,128], index: 2, kind: input, shape index: {}]
  %s3 = inlined_call_operand.vmem [shape: f32[1,128], index: 3, kind: input, shape index: {}]
  %s4 = inlined_call_operand.vmem [shape: f32[16,1], index: 4, kind: output, shape index: {}]
  %s5 = sld [smem:[#allocation0]]
  $region65: #{tpu_custom_call.1} parent=0
    _
  %s7 = ssub.s32 1, %s5
  %s8 = scalar_select 0, %s7, %s5
  $region1: #{tpu_custom_call.1} parent=0
    #allocation4 [shape = 'u8[8192]{0}', space=vmem, size = 0x2000, scoped, tag = 'input window, operand 0']
    #allocation5 [shape = 's32[2]{0}', space=sflag, size = 0x8, scoped, tag = 'scoped memory for tpu_custom_call.1']
    #allocation6 [shape = 'u8[65536]{0}', space=vmem, size = 0x10000, scoped, tag = 'input window, operand 1, single buffered']
    #allocation7 [shape = 's32[1]{0}', space=sflag, size = 0x4, scoped, tag = 'scoped memory for tpu_custom_call.1']
    %9 = vsyncpa [#allocation5], 0
    %s10 = scalar_lea.sflag [#allocation5], 1
    %11 = vsyncpa %s10, 0
    %12 = vsyncpa [#allocation7], 0
    loop: start=0, step=1, limit=4
    $region2: #{tpu_custom_call.1} parent=1 // loop_pre_header
      _
    $region3: #{tpu_custom_call.1} parent=1 // loop_header
      %s14 = sphi 0, %s18
      %p15 = scmp.ge.s32.totalorder %s14, 4
      %s21 = sphi 0, %s33
      %s22 = sphi 0, %s29
      %s23 = sphi 0, %s21
      %s24 = sphi 0, %s22
      %s25 = sphi 0, %s23
      %s26 = sphi 0, %s24
      %s36 = sphi 0, %s38
      %s39 = sphi 0, %s36
      %s40 = sphi 0, %s39
      %s56 = sphi 0, %s40
      %s62 = sphi 0, %s64
      %s65 = sphi 0, %s62
      %s66 = sphi 0, %s65
      %s82 = sphi 0, %s66
      %s88 = sphi 0, %s90
      %s91 = sphi 0, %s88
      %s92 = sphi 0, %s91
      %s108 = sphi 0, %s92
      %s114 = sphi 0, %s116
      %s117 = sphi 0, %s114
      %s118 = sphi 0, %s117
      %s134 = sphi 0, %s118
      %s140 = sphi 0, %s142
      %s143 = sphi 0, %s140
      %s144 = sphi 0, %s143
      %s160 = sphi 0, %s144
    $region4: #{tpu_custom_call.1} parent=1 // loop_header_branch
      %17 = sbr.rel (%p15) target = $region8
    $region5: #{tpu_custom_call.1} parent=1 // loop_body
      %s19 = ssub.s32 %s14, 1
      %s20 = ssub.s32 %s14, 2
      %s27 = sadd.s32 1, %s22
      %p28 = scmp.ge.s32.totalorder %s27, 1
      %s29 = scalar_select %p28, 0, %s27
      %s30 = sadd.s32 1, %s21
      %s31 = scalar_select %p28, %s30, %s21
      %p32 = scmp.ge.s32.totalorder %s31, 2
      %s33 = scalar_select %p32, 0, %s31
      %s34 = ssub.s32 %s21, %s33
      %p35 = scmp.eq.s32.totalorder %s34, 0
      %s37 = sadd.s32 %s36, 1
      %s38 = scalar_select %p35, %s36, %s37
      %p41 = pneg %p35
      %p42 = scmp.eq.s32.totalorder %s14, 1
      %p43 = por %p41, %p42
      %p44 = scmp.ne.s32.totalorder %s36, %s39
      %p45 = scmp.eq.s32.totalorder %s14, 0
      %p46 = por %p44, %p45
      %p47 = scmp.ne.s32.totalorder %s36, %s39
      %p48 = scmp.eq.s32.totalorder %s19, 1
      %p49 = por %p47, %p48
      %p50 = scmp.ne.s32.totalorder %s39, %s40
      %p51 = scmp.eq.s32.totalorder %s19, 0
      %p52 = por %p50, %p51
      %p53 = scmp.ne.s32.totalorder %s39, %s40
      %p54 = scmp.eq.s32.totalorder %s20, 1
      %p55 = por %p53, %p54
      %p57 = scmp.ne.s32.totalorder %s40, %s56
      %p58 = scmp.eq.s32.totalorder %s20, 0
      %p59 = por %p57, %p58
      %s60 = ssub.s32 %s22, %s29
      %p61 = scmp.eq.s32.totalorder %s60, 0
      %s63 = sadd.s32 %s62, 1
      %s64 = scalar_select %p61, %s62, %s63
      %p67 = pneg %p61
      %p68 = scmp.eq.s32.totalorder %s14, 1
      %p69 = por %p67, %p68
      %p70 = scmp.ne.s32.totalorder %s62, %s65
      %p71 = scmp.eq.s32.totalorder %s14, 0
      %p72 = por %p70, %p71
      %p73 = scmp.ne.s32.totalorder %s62, %s65
      %p74 = scmp.eq.s32.totalorder %s19, 1
      %p75 = por %p73, %p74
      %p76 = scmp.ne.s32.totalorder %s65, %s66
      %p77 = scmp.eq.s32.totalorder %s19, 0
      %p78 = por %p76, %p77
      %p79 = scmp.ne.s32.totalorder %s65, %s66
      %p80 = scmp.eq.s32.totalorder %s20, 1
      %p81 = por %p79, %p80
      %p83 = scmp.ne.s32.totalorder %s66, %s82
      %p84 = scmp.eq.s32.totalorder %s20, 0
      %p85 = por %p83, %p84
      %s86 = ssub.s32 %s22, %s29
      %p87 = scmp.eq.s32.totalorder %s86, 0
      %s89 = sadd.s32 %s88, 1
      %s90 = scalar_select %p87, %s88, %s89
      %p93 = pneg %p87
      %p94 = scmp.eq.s32.totalorder %s14, 1
      %p95 = por %p93, %p94
      %p96 = scmp.ne.s32.totalorder %s88, %s91
      %p97 = scmp.eq.s32.totalorder %s14, 0
      %p98 = por %p96, %p97
      %p99 = scmp.ne.s32.totalorder %s88, %s91
      %p100 = scmp.eq.s32.totalorder %s19, 1
      %p101 = por %p99, %p100
      %p102 = scmp.ne.s32.totalorder %s91, %s92
      %p103 = scmp.eq.s32.totalorder %s19, 0
      %p104 = por %p102, %p103
      %p105 = scmp.ne.s32.totalorder %s91, %s92
      %p106 = scmp.eq.s32.totalorder %s20, 1
      %p107 = por %p105, %p106
      %p109 = scmp.ne.s32.totalorder %s92, %s108
      %p110 = scmp.eq.s32.totalorder %s20, 0
      %p111 = por %p109, %p110
      %s112 = ssub.s32 %s22, %s29
      %p113 = scmp.eq.s32.totalorder %s112, 0
      %s115 = sadd.s32 %s114, 1
      %s116 = scalar_select %p113, %s114, %s115
      %p119 = pneg %p113
      %p120 = scmp.eq.s32.totalorder %s14, 1
      %p121 = por %p119, %p120
      %p122 = scmp.ne.s32.totalorder %s114, %s117
      %p123 = scmp.eq.s32.totalorder %s14, 0
      %p124 = por %p122, %p123
      %p125 = scmp.ne.s32.totalorder %s114, %s117
      %p126 = scmp.eq.s32.totalorder %s19, 1
      %p127 = por %p125, %p126
      %p128 = scmp.ne.s32.totalorder %s117, %s118
      %p129 = scmp.eq.s32.totalorder %s19, 0
      %p130 = por %p128, %p129
      %p131 = scmp.ne.s32.totalorder %s117, %s118
      %p132 = scmp.eq.s32.totalorder %s20, 1
      %p133 = por %p131, %p132
      %p135 = scmp.ne.s32.totalorder %s118, %s134
      %p136 = scmp.eq.s32.totalorder %s20, 0
      %p137 = por %p135, %p136
      %s138 = ssub.s32 %s21, %s33
      %p139 = scmp.eq.s32.totalorder %s138, 0
      %s141 = sadd.s32 %s140, 1
      %s142 = scalar_select %p139, %s140, %s141
      %p145 = pneg %p139
      %p146 = scmp.eq.s32.totalorder %s14, 1
      %p147 = por %p145, %p146
      %p148 = scmp.ne.s32.totalorder %s140, %s143
      %p149 = scmp.eq.s32.totalorder %s14, 0
      %p150 = por %p148, %p149
      %p151 = scmp.ne.s32.totalorder %s140, %s143
      %p152 = scmp.eq.s32.totalorder %s19, 1
      %p153 = por %p151, %p152
      %p154 = scmp.ne.s32.totalorder %s143, %s144
      %p155 = scmp.eq.s32.totalorder %s19, 0
      %p156 = por %p154, %p155
      %p157 = scmp.ne.s32.totalorder %s143, %s144
      %p158 = scmp.eq.s32.totalorder %s20, 1
      %p159 = por %p157, %p158
      %p161 = scmp.ne.s32.totalorder %s144, %s160
      %p162 = scmp.eq.s32.totalorder %s20, 0
      %p163 = por %p161, %p162
      %p164 = scmp.le.s32.totalorder 1, %s14
      %p165 = scmp.lt.s32.totalorder %s14, 3
      %p166 = pnand %p164, %p165
      %p167 = pneg %p166
      // Predicated region
      $region9: #{tpu_custom_call.1} parent=5 // pred_check
        _
      $region10: #{tpu_custom_call.1} parent=5 // pred_check_branch
        %169 = sbr.rel (%p166) target = $region12
      $region11: #{tpu_custom_call.1} parent=5 // pred_region
        %s170 = ssub.s32 %s14, 1
        // Predicated region
        $region13: #{tpu_custom_call.1} parent=11 // pred_check
          %p171 = pneg %p78
        $region14: #{tpu_custom_call.1} parent=11 // pred_check_branch
          %173 = sbr.rel (%p171) target = $region16
        $region15: #{tpu_custom_call.1} parent=11 // pred_region
          %s175 = ssub.s32 2048, 2048
          %176 = vsyncadd [#allocation7], %s175
          %s177 = smul.addr %s24, 128
          %s178 = scalar_lea.hbm %s1, %s177
          %s179 = sshll.u32 [#allocation6], 4
          %s180 = int_to_ptr.vmem [resolvable:$true] %s179
          %185 = dma.hbm_to_vmem [thread:$0]  %s178, 2048, %s180, [#allocation7], 128, 128, 8
        $region16: #{tpu_custom_call.1} parent=11 // pred_fallthru
          _
        // Predicated region
        $region17: #{tpu_custom_call.1} parent=11 // pred_check
          %p186 = pneg %p104
        $region18: #{tpu_custom_call.1} parent=11 // pred_check_branch
          %188 = sbr.rel (%p186) target = $region20
        $region19: #{tpu_custom_call.1} parent=11 // pred_region
          %p189 = scmp.lt.s32.totalorder %s24, 0
          %s190 = scalar_select %p189, %s24, 0
          %s191 = scalar_lea.vmem %s2, %s190
        $region20: #{tpu_custom_call.1} parent=11 // pred_fallthru
          _
        // Predicated region
        $region21: #{tpu_custom_call.1} parent=11 // pred_check
          %p192 = pneg %p130
        $region22: #{tpu_custom_call.1} parent=11 // pred_check_branch
          %194 = sbr.rel (%p192) target = $region24
        $region23: #{tpu_custom_call.1} parent=11 // pred_region
          %p195 = scmp.lt.s32.totalorder %s24, 0
          %s196 = scalar_select %p195, %s24, 0
          %s197 = scalar_lea.vmem %s3, %s196
        $region24: #{tpu_custom_call.1} parent=11 // pred_fallthru
          _
      $region12: #{tpu_custom_call.1} parent=5 // pred_fallthru
        _
      %p198 = scmp.lt.s32.totalorder %s14, 2
      // Predicated region
      $region25: #{tpu_custom_call.1} parent=5 // pred_check
        %p199 = pneg %p198
      $region26: #{tpu_custom_call.1} parent=5 // pred_check_branch
        %201 = sbr.rel (%p199) target = $region28
      $region27: #{tpu_custom_call.1} parent=5 // pred_region
        // Predicated region
        $region29: #{tpu_custom_call.1} parent=27 // pred_check
          %p202 = pneg %p46
        $region30: #{tpu_custom_call.1} parent=27 // pred_check_branch
          %204 = sbr.rel (%p202) target = $region32
        $region31: #{tpu_custom_call.1} parent=27 // pred_region
          %s205 = sand.u32 %s36, 1
          %s206 = scalar_lea.sflag [#allocation5], %s205
          %s207 = sand.u32 %s36, 1
          %s208 = smul.addr %s207, 8
          %s209 = scalar_lea.vmem [#allocation4], %s208
          %s211 = ssub.s32 128, 128
          %212 = vsyncadd %s206, %s211
          %s213 = smul.addr %s21, 128
          %s214 = scalar_lea.hbm %s0, %s213
          %s216 = sshll.u32 %s209, 4
          %s217 = int_to_ptr.vmem [resolvable:$true] %s216
          %219 = dma.hbm_to_vmem [thread:$0]  %s214, 128, %s217, %s206
        $region32: #{tpu_custom_call.1} parent=27 // pred_fallthru
          _
      $region28: #{tpu_custom_call.1} parent=5 // pred_fallthru
        _
      %p220 = scmp.le.s32.totalorder 1, %s14
      %p221 = scmp.lt.s32.totalorder %s14, 3
      %p222 = pnand %p220, %p221
      %p223 = pneg %p222
      // Predicated region
      $region33: #{tpu_custom_call.1} parent=5 // pred_check
        _
      $region34: #{tpu_custom_call.1} parent=5 // pred_check_branch
        %225 = sbr.rel (%p222) target = $region36
      $region35: #{tpu_custom_call.1} parent=5 // pred_region
        %s226 = ssub.s32 %s14, 1
        %s227 = sand.u32 %s39, 1
        %s228 = scalar_lea.sflag [#allocation5], %s227
        %s229 = sand.u32 %s39, 1
        %s230 = smul.addr %s229, 8
        %s231 = scalar_lea.vmem [#allocation4], %s230
        // Predicated region
        $region37: #{tpu_custom_call.1} parent=35 // pred_check
          %p232 = pneg %p52
        $region38: #{tpu_custom_call.1} parent=35 // pred_check_branch
          %234 = sbr.rel (%p232) target = $region40
        $region39: #{tpu_custom_call.1} parent=35 // pred_region
          %235 = dma.done %s228, 128
        $region40: #{tpu_custom_call.1} parent=35 // pred_fallthru
          _
        // Predicated region
        $region41: #{tpu_custom_call.1} parent=35 // pred_check
          %p236 = pneg %p78
        $region42: #{tpu_custom_call.1} parent=35 // pred_check_branch
          %238 = sbr.rel (%p236) target = $region44
        $region43: #{tpu_custom_call.1} parent=35 // pred_region
          %239 = dma.done [#allocation7], 2048
        $region44: #{tpu_custom_call.1} parent=35 // pred_fallthru
          _
        %s240 = sand.u32 %s39, 1
        %s241 = scalar_lea.sflag [#allocation5], %s240
        %s242 = sand.u32 %s39, 1
        %s243 = smul.addr %s242, 8
        %s244 = scalar_lea.vmem [#allocation4], %s243
        %p245 = pneg %p52
        %p246 = pneg %p49
        %p247 = pneg %p78
        %p248 = pneg %p75
        %p249 = scmp.lt.s32.totalorder %s24, 0
        %s250 = scalar_select %p249, %s24, 0
        %s251 = scalar_lea.vmem %s2, %s250
        %p252 = pneg %p104
        %p253 = pneg %p101
        %p254 = scmp.lt.s32.totalorder %s24, 0
        %s255 = scalar_select %p254, %s24, 0
        %s256 = scalar_lea.vmem %s3, %s255
        %p257 = pneg %p130
        %p258 = pneg %p127
        %p259 = pneg %p156
        %p260 = pneg %p153
        %p261 = scmp.lt.s32.totalorder %s23, 1
        %s262 = scalar_select %p261, %s23, 1
        %s263 = smul.addr %s262, 8
        %s264 = scalar_lea.vmem %s4, %s263
        %p265 = scmp.lt.s32.totalorder %s24, 0
        %s266 = scalar_select %p265, %s24, 0
        %s267 = scalar_lea.vmem %s2, %s266
        %p268 = scmp.lt.s32.totalorder %s24, 0
        %s269 = scalar_select %p268, %s24, 0
        %s270 = scalar_lea.vmem %s3, %s269
        %p271 = scmp.lt.s32.totalorder %s23, 1
        %s272 = scalar_select %p271, %s23, 1
        %s273 = smul.addr %s272, 8
        %s274 = scalar_lea.vmem %s4, %s273
        %p275 = scmp.eq.s32.totalorder %s24, 0
        // Predicated region
        $region45: #{tpu_custom_call.1} parent=35 // pred_check
          %p276 = pneg %p275
        $region46: #{tpu_custom_call.1} parent=35 // pred_check_branch
          %278 = sbr.rel (%p276) target = $region48
        $region47: #{tpu_custom_call.1} parent=35 // pred_region
          %v279 = vld [vmem:[%s231] sm:$0xff]
          %v280 = vmul.f32 %v279, %v279
          %281 = vadd.xlane.f32.xlu0 %v280
          %v282 = vpop.xlane.xlu0 %281
          %vm283 = vcmask 7168
          %284 = vst.msk [vmem:[#allocation3] sm:$0xff] %vm283, %v282
          %285 = vst.msk [vmem:[#allocation2] sm:$0xff] %vm283, 0.0
        $region48: #{tpu_custom_call.1} parent=35 // pred_fallthru
          _
        %v286 = vld [vmem:[%s231] sm:$0xff]
        %v287 = vld [vmem:[#allocation6] sm:$0xff]
        %v288 = vld [vmem:[#allocation6 + $0x8] sm:$0xff]
        %v289 = vld [vmem:[#allocation6 + $0x10] sm:$0xff]
        %v290 = vld [vmem:[#allocation6 + $0x18] sm:$0xff]
        %v291 = vld [vmem:[#allocation6 + $0x20] sm:$0xff]
        %v292 = vld [vmem:[#allocation6 + $0x28] sm:$0xff]
        %v293 = vld [vmem:[#allocation6 + $0x30] sm:$0xff]
        %v294 = vld [vmem:[#allocation6 + $0x38] sm:$0xff]
        %v295 = vld [vmem:[#allocation6 + $0x40] sm:$0xff]
        %v296 = vld [vmem:[#allocation6 + $0x48] sm:$0xff]
        %v297 = vld [vmem:[#allocation6 + $0x50] sm:$0xff]
        %v298 = vld [vmem:[#allocation6 + $0x58] sm:$0xff]
        %v299 = vld [vmem:[#allocation6 + $0x60] sm:$0xff]
        %v300 = vld [vmem:[#allocation6 + $0x68] sm:$0xff]
        %v301 = vld [vmem:[#allocation6 + $0x70] sm:$0xff]
        %v302 = vld [vmem:[#allocation6 + $0x78] sm:$0xff]
        %303 = vmatprep.subr.mxu0 0.0
        %304 = vmatpush1.msra.mxu0 %v287
        %305 = vmatprep.subr.mxu0 0.0
        %306 = vmatpush1.msra.mxu0 %v288
        %307 = vmatprep.subr.mxu0 0.0
        %308 = vmatpush1.msra.mxu0 %v289
        %309 = vmatprep.subr.mxu0 0.0
        %310 = vmatpush1.msra.mxu0 %v290
        %311 = vmatprep.subr.mxu0 0.0
        %312 = vmatpush1.msra.mxu0 %v291
        %313 = vmatprep.subr.mxu0 0.0
        %314 = vmatpush1.msra.mxu0 %v292
        %315 = vmatprep.subr.mxu0 0.0
        %316 = vmatpush1.msra.mxu0 %v293
        %317 = vmatprep.subr.mxu0 0.0
        %318 = vmatpush1.msra.mxu0 %v294
        %319 = vmatprep.subr.mxu0 0.0
        %320 = vmatpush1.msra.mxu0 %v295
        %321 = vmatprep.subr.mxu0 0.0
        %322 = vmatpush1.msra.mxu0 %v296
        %323 = vmatprep.subr.mxu0 0.0
        %324 = vmatpush1.msra.mxu0 %v297
        %325 = vmatprep.subr.mxu0 0.0
        %326 = vmatpush1.msra.mxu0 %v298
        %327 = vmatprep.subr.mxu0 0.0
        %328 = vmatpush1.msra.mxu0 %v299
        %329 = vmatprep.subr.mxu0 0.0
        %330 = vmatpush1.msra.mxu0 %v300
        %331 = vmatprep.subr.mxu0 0.0
        %332 = vmatpush1.msra.mxu0 %v301
        %333 = vmatprep.subr.mxu0 0.0
        %334 = vmatpush1.msra.mxu0 %v302
        %335 = vmatprep.subr.mxu0 0.0
        %336 = vmatpush1.msra.mxu0 0.0
        %337 = vmatprep.subr.mxu0 0.0
        %338 = vmatpush1.msra.mxu0 0.0
        %339 = vmatprep.subr.mxu0 0.0
        %340 = vmatpush1.msra.mxu0 0.0
        %341 = vmatprep.subr.mxu0 0.0
        %342 = vmatpush1.msra.mxu0 0.0
        %343 = vmatprep.subr.mxu0 0.0
        %344 = vmatpush1.msra.mxu0 0.0
        %345 = vmatprep.subr.mxu0 0.0
        %346 = vmatpush1.msra.mxu0 0.0
        %347 = vmatprep.subr.mxu0 0.0
        %348 = vmatpush1.msra.mxu0 0.0
        %349 = vmatprep.subr.mxu0 0.0
        %350 = vmatpush1.msra.mxu0 0.0
        %351 = vmatprep.subr.mxu0 0.0
        %352 = vmatpush1.msra.mxu0 0.0
        %353 = vmatprep.subr.mxu0 0.0
        %354 = vmatpush1.msra.mxu0 0.0
        %355 = vmatprep.subr.mxu0 0.0
        %356 = vmatpush1.msra.mxu0 0.0
        %357 = vmatprep.subr.mxu0 0.0
        %358 = vmatpush1.msra.mxu0 0.0
        %359 = vmatprep.subr.mxu0 0.0
        %360 = vmatpush1.msra.mxu0 0.0
        %361 = vmatprep.subr.mxu0 0.0
        %362 = vmatpush1.msra.mxu0 0.0
        %363 = vmatprep.subr.mxu0 0.0
        %364 = vmatpush1.msra.mxu0 0.0
        %365 = vmatprep.subr.mxu0 0.0
        %366 = vmatpush1.msra.mxu0 0.0
        %367 = vmatprep.mubr.f32.mxu0 0.0
        %368 = vmatmul.mubr.f32.gmra.mrb[0].mxu0 %v286
        %v369 = vpop.f32.mrb[0].mxu0
        %v370 = vadd.f32 0.0, %v369
        %v371 = vpop.f32.mrb[0].mxu0
        %372 = vdwg.mxu0
        %v373 = vld [vmem:[#allocation3] sm:$0xff]
        %v374 = vld [vmem:[%s267] sm:$0x1]
        %376 = vset.pattern.permute.xlu0 0
        %377 = vperm.xlu0 %376, %v373
        %v378 = vpop.permute.xlu0 %377
        %v381 = vlaneseq
        %v382 = vshrl.u32 %v381, 7
        %v383 = vsub.s32 0, %v382
        %v384 = vrot.slane %v374, %v383
        %v386 = vadd.f32 %v378, %v384
        %v387 = vmul.f32 %v370, 2.0
        %v388 = vsub.f32 %v386, %v387
        %v389 = vmax.f32 %v388, 0.0
        %v390 = vmul.f32 %v389, -0.22222222
        %v391 = vmul.f32 %v390, 1.442695
        %v392 = vpow.pop %v391
        %v393 = vld [vmem:[#allocation2] sm:$0xff]
        %v394 = vld [vmem:[%s270] sm:$0x1]
        %v396 = vlaneseq
        %v397 = vshrl.u32 %v396, 7
        %v398 = vsub.s32 0, %v397
        %v399 = vrot.slane %v394, %v398
        %v401 = vmul.f32 %v392, %v399
        %402 = vadd.xlane.f32.xlu0 %v401
        %v403 = vpop.xlane.xlu0 %402
        %v404 = vadd.f32 %v393, %v403
        %vm405 = vcmask 7168
        %406 = vst.msk [vmem:[#allocation2] sm:$0xff] %vm405, %v404
        // Predicated region
        $region49: #{tpu_custom_call.1} parent=35 // pred_check
          %p407 = pneg %p275
        $region50: #{tpu_custom_call.1} parent=35 // pred_check_branch
          %409 = sbr.rel (%p407) target = $region52
        $region51: #{tpu_custom_call.1} parent=35 // pred_region
          %v410 = vld [vmem:[#allocation2] sm:$0xff]
          %411 = vst.msk [vmem:[%s274] sm:$0xff] %vm405, %v410
        $region52: #{tpu_custom_call.1} parent=35 // pred_fallthru
          _
        %p412 = scmp.lt.s32.totalorder %s23, 1
        %s413 = scalar_select %p412, %s23, 1
        %s414 = smul.addr %s413, 8
        %s415 = scalar_lea.vmem %s4, %s414
        // Predicated region
        $region53: #{tpu_custom_call.1} parent=35 // pred_check
          %p416 = pneg %p153
        $region54: #{tpu_custom_call.1} parent=35 // pred_check_branch
          %418 = sbr.rel (%p416) target = $region56
        $region55: #{tpu_custom_call.1} parent=35 // pred_region
          _
        $region56: #{tpu_custom_call.1} parent=35 // pred_fallthru
          _
      $region36: #{tpu_custom_call.1} parent=5 // pred_fallthru
        _
      %p419 = scmp.le.s32.totalorder 2, %s14
      // Predicated region
      $region57: #{tpu_custom_call.1} parent=5 // pred_check
        %p420 = pneg %p419
      $region58: #{tpu_custom_call.1} parent=5 // pred_check_branch
        %422 = sbr.rel (%p420) target = $region60
      $region59: #{tpu_custom_call.1} parent=5 // pred_region
        %s423 = ssub.s32 %s14, 2
        // Predicated region
        $region61: #{tpu_custom_call.1} parent=59 // pred_check
          %p424 = pneg %p159
        $region62: #{tpu_custom_call.1} parent=59 // pred_check_branch
          %426 = sbr.rel (%p424) target = $region64
        $region63: #{tpu_custom_call.1} parent=59 // pred_region
          %p427 = scmp.lt.s32.totalorder %s25, 1
          %s428 = scalar_select %p427, %s25, 1
          %s429 = smul.addr %s428, 8
          %s430 = scalar_lea.vmem %s4, %s429
        $region64: #{tpu_custom_call.1} parent=59 // pred_fallthru
          _
      $region60: #{tpu_custom_call.1} parent=5 // pred_fallthru
        _
    $region6: #{tpu_custom_call.1} parent=1 // loop_footer
      %s18 = sadd.s32 1, %s14
    $region7: #{tpu_custom_call.1} parent=1 // loop_footer_branch
      %13 = sbr.rel target = $region3
    $region8: #{tpu_custom_call.1} parent=1 // loop_exit
      _
    %431 = vsyncpa [#allocation5], 1
    %s432 = scalar_lea.sflag [#allocation5], 1
    %433 = vsyncpa %s432, 1
    %434 = vsyncpa [#allocation7], 1

</llo_original>
